<compile_context>
chip_gen: v7x
topology: tpu7x:2x2x1
jax: 0.10.0
libtpu: 0.0.40
codegen_flags: <defaults>
</compile_context>

<pallas_src>
import functools

import jax
import jax.numpy as jnp
from jax import lax
from jax.experimental import pallas as pl
from jax.experimental.pallas import tpu as pltpu


@functools.lru_cache(maxsize=None)
def _roll_matches_jnp_roll() -> bool:
    """One-time on-device calibration of pltpu.roll's direction convention.

    Returns True if pltpu.roll(x, shift, axis) behaves like jnp.roll
    (result[i] = x[(i - shift) % N]).  Keeps the 3x3 tap shifts correct
    regardless of the rotate lowering's sign convention.
    """
    def probe(x_ref, o_ref):
        o_ref[...] = pltpu.roll(x_ref[...], shift=1, axis=1)

    x = jnp.tile(jnp.arange(256, dtype=jnp.float32)[None, :], (8, 1))
    y = pl.pallas_call(
        probe, out_shape=jax.ShapeDtypeStruct((8, 256), jnp.float32))(x)
    return bool(float(y[0, 0]) == 255.0)


def fire_kernel(x_ref, wsq_ref, bsq_ref, we1_ref, be1_ref, we3_ref, be3_ref,
                o_ref, *, H, W, roll_like_jnp):
    HW = H * W
    Ce1 = we1_ref.shape[0]

    # ---- squeeze 1x1 conv + ReLU:  (Csq, Cin) @ (Cin, HW) ----
    x = x_ref[0]                                              # (Cin, HW) bf16
    s = jnp.dot(wsq_ref[...], x, preferred_element_type=jnp.float32)
    s = jnp.maximum(s + bsq_ref[...], 0.0)                    # (Csq, HW) f32

    s_bf = s.astype(jnp.bfloat16)

    # ---- expand 1x1 conv + ReLU -> output rows [0, Ce1) ----
    e1 = jnp.dot(we1_ref[...], s_bf, preferred_element_type=jnp.float32)
    e1 = jnp.maximum(e1 + be1_ref[...], 0.0)                  # (Ce1, HW) f32
    o_ref[0, 0:Ce1, :] = e1.astype(o_ref.dtype)

    # ---- expand 3x3 conv (padding=1) + ReLU -> output rows [Ce1, Ce1+Ce3) ----
    # Tap (ky, kx) needs t[:, f] == s[:, f + d] with d = (ky-1)*W + (kx-1),
    # zeroed at the image border (conv zero padding).  Shifts run on the XLU;
    # border handling is a lane mask built from an iota over the flat index.
    flat = lax.broadcasted_iota(jnp.int32, (1, HW), 1)
    if (W & (W - 1)) == 0:                     # power-of-two W: cheap bit mask
        w_idx = jnp.bitwise_and(flat, W - 1)
    else:
        w_idx = flat % W

    taps = []
    for ky in range(3):
        dy = ky - 1
        for kx in range(3):
            dx = kx - 1
            d = dy * W + dx
            if d == 0:
                t = s
            else:
                shift = (-d) % HW if roll_like_jnp else d % HW
                t = pltpu.roll(s, shift=shift, axis=1)
            conds = []
            if dy == -1:
                conds.append(flat >= W)                 # h - 1 >= 0
            elif dy == 1:
                conds.append(flat < (H - 1) * W)        # h + 1 <= H - 1
            if dx == -1:
                conds.append(w_idx >= 1)                # w - 1 >= 0
            elif dx == 1:
                conds.append(w_idx < W - 1)             # w + 1 <= W - 1
            if conds:
                m = conds[0]
                for c in conds[1:]:
                    m = jnp.logical_and(m, c)
                t = jnp.where(m, t, 0.0)
            taps.append(t)

    stacked = jnp.concatenate(taps, axis=0).astype(jnp.bfloat16)   # (9*Csq, HW)
    e3 = jnp.dot(we3_ref[...], stacked, preferred_element_type=jnp.float32)
    e3 = jnp.maximum(e3 + be3_ref[...], 0.0)                       # (Ce3, HW)
    o_ref[0, Ce1:, :] = e3.astype(o_ref.dtype)


def fire_module(x_nchw, w_sq, b_sq, w_e1, b_e1, w_e3, b_e3):
    """FireModule forward (matches torch: cat([relu(e1(s)), relu(e3(s))], dim=1)).

    x_nchw : (N, Cin, H, W) float32
    w_sq   : (Csq, Cin)        b_sq : (Csq,)       -- 1x1 squeeze conv
    w_e1   : (Ce1, Csq)        b_e1 : (Ce1,)       -- 1x1 expand conv
    w_e3   : (Ce3, Csq, 3, 3)  b_e3 : (Ce3,)       -- 3x3 expand conv (OIHW)
    Returns (N, Ce1 + Ce3, H, W) float32.
    """
    N, Cin, H, W = x_nchw.shape
    Csq = w_sq.shape[0]
    Ce1 = w_e1.shape[0]
    Ce3 = w_e3.shape[0]
    Cout = Ce1 + Ce3
    HW = H * W

    # Lane-dense layout: channels on sublanes, flattened spatial on lanes.
    x = x_nchw.reshape(N, Cin, HW).astype(jnp.bfloat16)

    # Weights pre-arranged for matmul (bf16 MXU inputs, f32 accumulation).
    wsq = w_sq.astype(jnp.bfloat16)                                   # (Csq, Cin)
    we1 = w_e1.astype(jnp.bfloat16)                                   # (Ce1, Csq)
    we3 = jnp.transpose(w_e3, (0, 2, 3, 1)).reshape(Ce3, 9 * Csq)     # tap-major
    we3 = we3.astype(jnp.bfloat16)
    bsq = b_sq.reshape(Csq, 1).astype(jnp.float32)
    be1 = b_e1.reshape(Ce1, 1).astype(jnp.float32)
    be3 = b_e3.reshape(Ce3, 1).astype(jnp.float32)

    kernel = functools.partial(fire_kernel, H=H, W=W,
                               roll_like_jnp=_roll_matches_jnp_roll())

    out = pl.pallas_call(
        kernel,
        out_shape=jax.ShapeDtypeStruct((N, Cout, HW), jnp.float32),
        grid_spec=pltpu.PrefetchScalarGridSpec(
            num_scalar_prefetch=0,
            grid=(N,),
            in_specs=[
                pl.BlockSpec((1, Cin, HW), lambda n: (n, 0, 0)),
                pl.BlockSpec((Csq, Cin), lambda n: (0, 0)),
                pl.BlockSpec((Csq, 1), lambda n: (0, 0)),
                pl.BlockSpec((Ce1, Csq), lambda n: (0, 0)),
                pl.BlockSpec((Ce1, 1), lambda n: (0, 0)),
                pl.BlockSpec((Ce3, 9 * Csq), lambda n: (0, 0)),
                pl.BlockSpec((Ce3, 1), lambda n: (0, 0)),
            ],
            out_specs=pl.BlockSpec((1, Cout, HW), lambda n: (n, 0, 0)),
        ),
        # Independent per-image work: "parallel" lets v7x use both TensorCores.
        compiler_params=pltpu.CompilerParams(dimension_semantics=("parallel",)),
    )(x, wsq, bsq, we1, be1, we3, be3)

    return out.reshape(N, Cout, H, W)


def fire_reference(x, w_sq, b_sq, w_e1, b_e1, w_e3, b_e3):
    """Pure-JAX f32 reference (NCHW convs), for correctness checking."""
    def conv(x, w_oihw, b, pad):
        y = lax.conv_general_dilated(x, w_oihw, (1, 1), pad,
                                     dimension_numbers=("NCHW", "OIHW", "NCHW"))
        return y + b.reshape(1, -1, 1, 1)

    s = jax.nn.relu(conv(x, w_sq[:, :, None, None], b_sq, [(0, 0), (0, 0)]))
    e1 = jax.nn.relu(conv(s, w_e1[:, :, None, None], b_e1, [(0, 0), (0, 0)]))
    e3 = jax.nn.relu(conv(s, w_e3, b_e3, [(1, 1), (1, 1)]))
    return jnp.concatenate([e1, e3], axis=1)


if __name__ == "__main__":
    # FireModule(inplanes=4, squeeze_planes=8, expand1x1_planes=8, expand3x3_planes=8)
    N, Cin, H, W = 2, 4, 16, 16
    Csq, Ce1, Ce3 = 8, 8, 8

    key = jax.random.PRNGKey(0)
    ks = jax.random.split(key, 7)
    x = jax.random.normal(ks[0], (N, Cin, H, W), jnp.float32)

    # Deterministic synthetic parameters in PyTorch-style layouts.
    w_sq = 0.1 * jax.random.normal(ks[1], (Csq, Cin), jnp.float32)
    b_sq = 0.01 * jax.random.normal(ks[2], (Csq,), jnp.float32)
    w_e1 = 0.1 * jax.random.normal(ks[3], (Ce1, Csq), jnp.float32)
    b_e1 = 0.01 * jax.random.normal(ks[4], (Ce1,), jnp.float32)
    w_e3 = 0.1 * jax.random.normal(ks[5], (Ce3, Csq, 3, 3), jnp.float32)
    b_e3 = 0.01 * jax.random.normal(ks[6], (Ce3,), jnp.float32)

    out = jax.block_until_ready(fire_module(x, w_sq, b_sq, w_e1, b_e1, w_e3, b_e3))
    ref = jax.block_until_ready(fire_reference(x, w_sq, b_sq, w_e1, b_e1, w_e3, b_e3))

    assert out.shape == (N, Ce1 + Ce3, H, W), out.shape
    max_err = float(jnp.max(jnp.abs(out - ref)))
    assert jnp.allclose(out, ref, rtol=1e-2, atol=1e-2), max_err

    print("KERNEL_OK")
</pallas_src>

<mosaic_0001>
module attributes {stable_mosaic.version = 11 : i64} {
  func.func @probe(%arg0: memref<8x256xf32, #tpu.memory_space<vmem>>, %arg1: memref<8x256xf32, #tpu.memory_space<vmem>>) attributes {dimension_semantics = [], scalar_prefetch = 0 : i64, scratch_operands = 0 : i64, tpu.core_type = #tpu.core_type<tc>} {
    %c0 = arith.constant 0 : index
    %c0_0 = arith.constant 0 : index
    %0 = vector.load %arg0[%c0, %c0_0] : memref<8x256xf32, #tpu.memory_space<vmem>>, vector<8x256xf32>
    %c1_i32 = arith.constant 1 : i32
    %1 = tpu.dynamic_rotate %0 by %c1_i32 dim 1 : vector<8x256xf32>, i32 -> vector<8x256xf32>
    %c0_1 = arith.constant 0 : index
    %c0_2 = arith.constant 0 : index
    %2 = vector.load %arg1[%c0_1, %c0_2] : memref<8x256xf32, #tpu.memory_space<vmem>>, vector<8x256xf32>
    tpu.vector_store %arg1[%c0_1, %c0_2], %1 {strides = array<i32>} : memref<8x256xf32, #tpu.memory_space<vmem>>, vector<8x256xf32>,
    return
  }
}

</mosaic_0001>

<llo_original>
// kernel: tpu_custom_call.1
$region0: #{tpu_custom_call.1}
  #allocation0 [shape = 'u32[]', space=smem, size = 0x4, offset = 0x4, fixed_abs, tag = 'smem constant byte address 0x4 - core index']
  #allocation1 [shape = 'u32[144,128]{1,0:T(1,128)}', space=vmem, size = 0x12000, scoped, tag = 'internal scratch']
  %s0 = inlined_call_operand.hbm [shape: f32[8,256], index: 0, kind: input, shape index: {}]
  %s1 = inlined_call_operand.hbm [shape: f32[8,256], index: 1, kind: output, shape index: {}]
  %s2 = sld [smem:[#allocation0]]
  $region18: #{tpu_custom_call.1} parent=0
    _
  %s4 = ssub.s32 1, %s2
  %s5 = scalar_select 0, %s4, %s2
  $region1: #{tpu_custom_call.1} parent=0
    #allocation2 [shape = 'u8[8192]{0}', space=vmem, size = 0x2000, scoped, tag = 'input window, operand 0, single buffered']
    #allocation3 [shape = 's32[1]{0}', space=sflag, size = 0x4, scoped, tag = 'scoped memory for tpu_custom_call.1']
    #allocation4 [shape = 's32[1]{0}', space=sflag, size = 0x4, scoped, tag = 'scoped memory for tpu_custom_call.1']
    #allocation5 [shape = 'u8[8192]{0}', space=vmem, size = 0x2000, scoped, tag = 'output window, operand 0, single buffered']
    %6 = vsyncpa [#allocation3], 0
    %7 = vsyncpa [#allocation4], 0
    // Predicated region
    $region2: #{tpu_custom_call.1} parent=1 // pred_check
      _
    $region3: #{tpu_custom_call.1} parent=1 // pred_check_branch
      %9 = sbr.rel (0) target = $region5
    $region4: #{tpu_custom_call.1} parent=1 // pred_region
      %s11 = ssub.s32 256, 256
      %12 = vsyncadd [#allocation3], %s11
      %s14 = sshll.u32 [#allocation2], 4
      %s15 = int_to_ptr.vmem [resolvable:$true] %s14
      %17 = dma.hbm_to_vmem [thread:$0]  %s0, 256, %s15, [#allocation3]
    $region5: #{tpu_custom_call.1} parent=1 // pred_fallthru
      _
    // Predicated region
    $region6: #{tpu_custom_call.1} parent=1 // pred_check
      _
    $region7: #{tpu_custom_call.1} parent=1 // pred_check_branch
      %19 = sbr.rel (0) target = $region9
    $region8: #{tpu_custom_call.1} parent=1 // pred_region
      %20 = dma.done [#allocation3], 256
    $region9: #{tpu_custom_call.1} parent=1 // pred_fallthru
      _
    %v21 = vld [vmem:[#allocation2] sm:$0xff]
    %v22 = vld [vmem:[#allocation2 + $0x8] sm:$0xff]
    %23 = vrot.lane.b32.xlu0 %v21, 1
    %v24 = vpop.permute.xlu0 %23
    %25 = vrot.lane.b32.xlu0 %v22, 1
    %v26 = vpop.permute.xlu0 %25
    %v27 = vlaneseq
    %v28 = vand.u32 %v27, 127
    %vm29 = vcmp.lt.s32.totalorder %v28, 1
    %v30 = vsel %vm29, %v24, %v26
    %v31 = vsel %vm29, %v26, %v24
    %32 = vst [vmem:[#allocation5] sm:$0xff] %v31
    %33 = vst [vmem:[#allocation5 + $0x8] sm:$0xff] %v30
    // Predicated region
    $region10: #{tpu_custom_call.1} parent=1 // pred_check
      _
    $region11: #{tpu_custom_call.1} parent=1 // pred_check_branch
      %35 = sbr.rel (0) target = $region13
    $region12: #{tpu_custom_call.1} parent=1 // pred_region
      %s37 = ssub.s32 256, 256
      %38 = vsyncadd [#allocation4], %s37
      %s40 = sshll.u32 [#allocation5], 4
      %s41 = int_to_ptr.vmem [resolvable:$true] %s40
      %43 = dma.vmem_to_hbm [thread:$0]  %s41, 256, %s1, [#allocation4]
    $region13: #{tpu_custom_call.1} parent=1 // pred_fallthru
      _
    // Predicated region
    $region14: #{tpu_custom_call.1} parent=1 // pred_check
      _
    $region15: #{tpu_custom_call.1} parent=1 // pred_check_branch
      %45 = sbr.rel (0) target = $region17
    $region16: #{tpu_custom_call.1} parent=1 // pred_region
      %46 = dma.done [#allocation4], 256
    $region17: #{tpu_custom_call.1} parent=1 // pred_fallthru
      _
    %47 = vsyncpa [#allocation3], 1
    %48 = vsyncpa [#allocation4], 1

</llo_original>
